<compile_context>
chip_gen: v6e
topology: v6e:2x2x1
jax: 0.10.0
libtpu: 0.0.40
codegen_flags: <defaults>
</compile_context>

<pallas_src>
import functools

import jax
import jax.numpy as jnp
from jax.experimental import pallas as pl
from jax.experimental.pallas import tpu as pltpu

KH = KW = 3  # 3x3 convs, stride 1, pad 1 (SAME)


def _round_up(a, b):
    return -(-a // b) * b


# ----------------------------------------------------------------------------
# pltpu.roll direction probe (one tiny cached pallas_call).  Returns s such that
#   pltpu.roll(x, (s * k) % n, axis=-1)[..., p] == x[..., p + k]  (mod n)
# so the kernel is correct regardless of the rotate sign convention.
# ----------------------------------------------------------------------------
def _roll_probe_kernel(x_ref, o_ref):
    o_ref[...] = pltpu.roll(x_ref[...], 1, 1)


@functools.lru_cache(maxsize=1)
def _roll_sign():
    x = jnp.arange(8 * 128, dtype=jnp.int32).reshape(8, 128)
    y = pl.pallas_call(
        _roll_probe_kernel,
        out_shape=jax.ShapeDtypeStruct((8, 128), jnp.int32))(x)
    if bool(jnp.array_equal(y, jnp.roll(x, 1, axis=1))):
        return -1   # jnp.roll semantics: out[p] = x[p - shift]
    if bool(jnp.array_equal(y, jnp.roll(x, -1, axis=1))):
        return 1    # reversed semantics: out[p] = x[p + shift]
    raise AssertionError("unexpected pltpu.roll semantics")


# ----------------------------------------------------------------------------
# Kernel
# ----------------------------------------------------------------------------
def _double_conv_kernel(x_ref, w1_ref, s1_ref, b1_ref, w2_ref, s2_ref, b2_ref,
                        o_ref, *, h_img, w_img, cin, cout, cpad1, cpad2, bn,
                        roll_sign):
    p_img = h_img * w_img
    pb = bn * p_img                      # pixels per grid step (lane axis)
    cdt = jnp.bfloat16

    # --- edge-validity masks, built in-kernel, hoisted once for both convs ---
    pix = jax.lax.broadcasted_iota(jnp.int32, (1, pb), 1)
    q = pix % p_img                      # pixel index within its image
    h = q // w_img
    w = q - h * w_img
    mh = {0: (h >= 1).astype(jnp.float32).astype(cdt),
          2: (h <= h_img - 2).astype(jnp.float32).astype(cdt)}
    mw = {0: (w >= 1).astype(jnp.float32).astype(cdt),
          2: (w <= w_img - 2).astype(jnp.float32).astype(cdt)}
    masks = []
    for kh in range(KH):
        for kw in range(KW):
            m = mh.get(kh)
            mm = mw.get(kw)
            if m is None:
                m = mm
            elif mm is not None:
                m = m * mm
            masks.append(m)              # None for the centre tap

    def pad_rows(a, rows, rows_to):
        # Zero-pad channels (sublane axis) to the bf16 granule; padded weight
        # columns are zero, so this never changes the matmul result.
        if rows_to == rows:
            return a
        return jnp.concatenate(
            [a, jnp.zeros((rows_to - rows, pb), cdt)], axis=0)

    def conv_bn_relu(x_bf, wr, sr, br):
        # x_bf: (Cpad, pb) bf16.  One Conv3x3(SAME) + folded BN + ReLU.
        taps = []
        for kh in range(KH):
            for kw in range(KW):
                shift = (kh - 1) * w_img + (kw - 1)   # tap reads x[p + shift]
                if shift == 0:
                    t = x_bf
                else:
                    t = pltpu.roll(x_bf, (roll_sign * shift) % pb, 1)
                m = masks[kh * KW + kw]
                if m is not None:
                    t = t * m            # kill wrapped / out-of-image sources
                taps.append(t)
        cols = jnp.concatenate(taps, axis=0)               # (9*Cpad, pb) bf16
        acc = jnp.dot(wr[...], cols,
                      preferred_element_type=jnp.float32)  # (Cout, pb) f32
        return jnp.maximum(acc * sr[...] + br[...], 0.0)   # folded BN + ReLU

    # Stack this step's bn images along the lane axis (each piece is P lanes,
    # a multiple of 128 whenever bn > 1), then channel-pad once.
    imgs = [x_ref[b].astype(cdt) for b in range(bn)]
    x_bf = imgs[0] if bn == 1 else jnp.concatenate(imgs, axis=1)   # (Cin, pb)
    x_bf = pad_rows(x_bf, cin, cpad1)

    y1 = conv_bn_relu(x_bf, w1_ref, s1_ref, b1_ref)        # (Cout, pb) f32
    y1_bf = pad_rows(y1.astype(cdt), cout, cpad2)
    y2 = conv_bn_relu(y1_bf, w2_ref, s2_ref, b2_ref)       # (Cout, pb) f32

    for b in range(bn):
        o_ref[b] = y2[:, b * p_img:(b + 1) * p_img].astype(o_ref.dtype)


# ----------------------------------------------------------------------------
# Wrapper
# ----------------------------------------------------------------------------
def _im2col_weights(w_oihw, cpad):
    """OIHW -> (Cout, 9*cpad) bf16, column index = (kh*3+kw)*cpad + c."""
    cout, cin, kh, kw = w_oihw.shape
    wt = jnp.transpose(w_oihw, (0, 2, 3, 1))               # (Cout, 3, 3, Cin)
    wt = jnp.pad(wt, ((0, 0), (0, 0), (0, 0), (0, cpad - cin)))
    return wt.reshape(cout, kh * kw * cpad).astype(jnp.bfloat16)


def double_conv_pallas(x_nchw, w1_oihw, g1, be1, w2_oihw, g2, be2, *, eps=1e-5,
                       running_mean1=None, running_var1=None,
                       running_mean2=None, running_var2=None):
    """Forward pass of DoubleConv (eval-mode BN).  Input/output are NCHW."""
    N, Cin, H, W = x_nchw.shape
    Cout = w1_oihw.shape[0]
    P = H * W

    # Images batched per grid step (only when the per-image pixel count keeps
    # lane concats / output slices 128-aligned).
    bn_cap = max(1, min(8, 2048 // P)) if P % 128 == 0 else 1
    BN = 1
    for d in range(1, N + 1):
        if N % d == 0 and d <= bn_cap:
            BN = d
    G = N // BN

    cpad1 = _round_up(Cin, 16)    # bf16 sublane granule
    cpad2 = _round_up(Cout, 16)

    # Activations: metadata reshape + bf16 cast at the HBM boundary (halves DMA).
    x_cp = x_nchw.reshape(N, Cin, P).astype(jnp.bfloat16)

    # Weights: im2col layout, channel-padded, bf16 for the MXU.
    w1m = _im2col_weights(w1_oihw, cpad1)
    w2m = _im2col_weights(w2_oihw, cpad2)

    # Fold eval-mode BN into per-channel scale/bias (f32).
    zeros = jnp.zeros((Cout,), jnp.float32)
    ones = jnp.ones((Cout,), jnp.float32)
    rm1 = zeros if running_mean1 is None else running_mean1.astype(jnp.float32)
    rv1 = ones if running_var1 is None else running_var1.astype(jnp.float32)
    rm2 = zeros if running_mean2 is None else running_mean2.astype(jnp.float32)
    rv2 = ones if running_var2 is None else running_var2.astype(jnp.float32)
    s1 = (g1.astype(jnp.float32) / jnp.sqrt(rv1 + eps))
    b1 = (be1.astype(jnp.float32) - s1 * rm1)
    s2 = (g2.astype(jnp.float32) / jnp.sqrt(rv2 + eps))
    b2 = (be2.astype(jnp.float32) - s2 * rm2)
    s1, b1 = s1.reshape(Cout, 1), b1.reshape(Cout, 1)
    s2, b2 = s2.reshape(Cout, 1), b2.reshape(Cout, 1)

    kernel = functools.partial(
        _double_conv_kernel, h_img=H, w_img=W, cin=Cin, cout=Cout,
        cpad1=cpad1, cpad2=cpad2, bn=BN, roll_sign=_roll_sign())

    grid_spec = pltpu.PrefetchScalarGridSpec(
        num_scalar_prefetch=0,
        grid=(G,),
        in_specs=[
            pl.BlockSpec((BN, Cin, P), lambda i: (i, 0, 0)),
            pl.BlockSpec((Cout, KH * KW * cpad1), lambda i: (0, 0)),
            pl.BlockSpec((Cout, 1), lambda i: (0, 0)),
            pl.BlockSpec((Cout, 1), lambda i: (0, 0)),
            pl.BlockSpec((Cout, KH * KW * cpad2), lambda i: (0, 0)),
            pl.BlockSpec((Cout, 1), lambda i: (0, 0)),
            pl.BlockSpec((Cout, 1), lambda i: (0, 0)),
        ],
        out_specs=pl.BlockSpec((BN, Cout, P), lambda i: (i, 0, 0)),
    )

    # Generation-aware scoped-VMEM budget (v7x: 48 MiB, v6e/v5e: 96 MiB).
    try:
        vmem_cap = pltpu.get_tpu_info().vmem_capacity_bytes
    except Exception:  # pragma: no cover - conservative fallback
        vmem_cap = 128 * 1024 * 1024
    vmem_limit = int(min(vmem_cap * 3 // 4, 96 * 1024 * 1024))

    flops = 2 * N * P * KH * KW * (Cin * Cout + Cout * Cout)
    bytes_accessed = int(x_cp.size * 2 + N * Cout * P * 4
                         + w1m.size * 2 + w2m.size * 2 + 4 * Cout * 4)

    out_cp = pl.pallas_call(
        kernel,
        out_shape=jax.ShapeDtypeStruct((N, Cout, P), jnp.float32),
        grid_spec=grid_spec,
        compiler_params=pltpu.CompilerParams(
            dimension_semantics=("parallel",),
            vmem_limit_bytes=vmem_limit,
        ),
        cost_estimate=pl.CostEstimate(
            flops=flops, transcendentals=0, bytes_accessed=bytes_accessed),
    )(x_cp, w1m, s1, b1, w2m, s2, b2)

    return out_cp.reshape(N, Cout, H, W)   # metadata-only; already NCHW


# ----------------------------------------------------------------------------
# Pure-JAX reference (mirrors the PyTorch module in eval mode)
# ----------------------------------------------------------------------------
def double_conv_ref(x_nchw, w1_oihw, g1, be1, w2_oihw, g2, be2, eps=1e-5):
    def conv(x, w):
        return jax.lax.conv_general_dilated(
            x, w, window_strides=(1, 1), padding=((1, 1), (1, 1)),
            dimension_numbers=("NCHW", "OIHW", "NCHW"))

    def bn_relu(y, g, b):
        yn = y / jnp.sqrt(1.0 + eps)     # running_mean=0, running_var=1
        return jnp.maximum(g[None, :, None, None] * yn +
                           b[None, :, None, None], 0.0)

    y = bn_relu(conv(x_nchw, w1_oihw), g1, be1)
    y = bn_relu(conv(y, w2_oihw), g2, be2)
    return y


if __name__ == "__main__":
    key = jax.random.PRNGKey(0)
    N, Cin, Cout, H, W = 2, 4, 8, 16, 16

    ks = jax.random.split(key, 6)
    x = jax.random.normal(ks[0], (N, Cin, H, W), jnp.float32)
    w1 = jax.random.normal(ks[1], (Cout, Cin, KH, KW), jnp.float32) * 0.1
    w2 = jax.random.normal(ks[2], (Cout, Cout, KH, KW), jnp.float32) * 0.1
    g1 = 1.0 + 0.1 * jax.random.normal(ks[3], (Cout,), jnp.float32)
    be1 = 0.1 * jax.random.normal(ks[4], (Cout,), jnp.float32)
    g2 = 1.0 + 0.1 * jax.random.normal(ks[5], (Cout,), jnp.float32)
    be2 = jnp.zeros((Cout,), jnp.float32)

    out = jax.block_until_ready(
        double_conv_pallas(x, w1, g1, be1, w2, g2, be2))
    ref = jax.block_until_ready(
        double_conv_ref(x, w1, g1, be1, w2, g2, be2))

    assert out.shape == (N, Cout, H, W), out.shape
    # Tolerance accounts for bf16 MXU operands (f32 accumulation) vs f32 reference.
    assert jnp.allclose(out, ref, atol=5e-2, rtol=5e-2), \
        float(jnp.max(jnp.abs(out - ref)))
    print("KERNEL_OK")
</pallas_src>

<mosaic_0001>
module attributes {stable_mosaic.version = 11 : i64} {
  func.func @_roll_probe_kernel(%arg0: memref<8x128xi32, #tpu.memory_space<vmem>>, %arg1: memref<8x128xi32, #tpu.memory_space<vmem>>) attributes {dimension_semantics = [], scalar_prefetch = 0 : i64, scratch_operands = 0 : i64, tpu.core_type = #tpu.core_type<tc>} {
    %c0 = arith.constant 0 : index
    %c0_0 = arith.constant 0 : index
    %0 = vector.load %arg0[%c0, %c0_0] : memref<8x128xi32, #tpu.memory_space<vmem>>, vector<8x128xi32>
    %c1_i32 = arith.constant 1 : i32
    %1 = tpu.dynamic_rotate %0 by %c1_i32 dim 1 : vector<8x128xi32>, i32 -> vector<8x128xi32>
    %c0_1 = arith.constant 0 : index
    %c0_2 = arith.constant 0 : index
    %2 = vector.load %arg1[%c0_1, %c0_2] : memref<8x128xi32, #tpu.memory_space<vmem>>, vector<8x128xi32>
    tpu.vector_store %arg1[%c0_1, %c0_2], %1 {strides = array<i32>} : memref<8x128xi32, #tpu.memory_space<vmem>>, vector<8x128xi32>,
    return
  }
}

</mosaic_0001>

<llo_original>
// kernel: tpu_custom_call.1
$region0: #{tpu_custom_call.1}
  #allocation0 [shape = 'u32[]', space=smem, size = 0x4, offset = 0x4, fixed_abs, tag = 'smem constant byte address 0x4 - core index']
  #allocation1 [shape = 'u32[144,128]{1,0:T(1,128)}', space=vmem, size = 0x12000, scoped, tag = 'internal scratch']
  %s0 = inlined_call_operand.hbm [shape: s32[8,128], index: 0, kind: input, shape index: {}]
  %s1 = inlined_call_operand.hbm [shape: s32[8,128], index: 1, kind: output, shape index: {}]
  %s2 = sld [smem:[#allocation0]]
  $region18: #{tpu_custom_call.1} parent=0
    _
  %s4 = ssub.s32 1, %s2
  %s5 = scalar_select 0, %s4, %s2
  $region1: #{tpu_custom_call.1} parent=0
    #allocation2 [shape = 'u8[4096]{0}', space=vmem, size = 0x1000, scoped, tag = 'input window, operand 0, single buffered']
    #allocation3 [shape = 's32[1]{0}', space=sflag, size = 0x4, scoped, tag = 'scoped memory for tpu_custom_call.1']
    #allocation4 [shape = 's32[1]{0}', space=sflag, size = 0x4, scoped, tag = 'scoped memory for tpu_custom_call.1']
    #allocation5 [shape = 'u8[4096]{0}', space=vmem, size = 0x1000, scoped, tag = 'output window, operand 0, single buffered']
    %6 = vsyncpa [#allocation3], 0
    %7 = vsyncpa [#allocation4], 0
    // Predicated region
    $region2: #{tpu_custom_call.1} parent=1 // pred_check
      _
    $region3: #{tpu_custom_call.1} parent=1 // pred_check_branch
      %9 = sbr.rel (0) target = $region5
    $region4: #{tpu_custom_call.1} parent=1 // pred_region
      %s11 = ssub.s32 128, 128
      %12 = vsyncadd [#allocation3], %s11
      %s14 = sshll.u32 [#allocation2], 4
      %s15 = int_to_ptr.vmem [resolvable:$true] %s14
      %17 = dma.hbm_to_vmem [thread:$0]  %s0, 128, %s15, [#allocation3]
    $region5: #{tpu_custom_call.1} parent=1 // pred_fallthru
      _
    // Predicated region
    $region6: #{tpu_custom_call.1} parent=1 // pred_check
      _
    $region7: #{tpu_custom_call.1} parent=1 // pred_check_branch
      %19 = sbr.rel (0) target = $region9
    $region8: #{tpu_custom_call.1} parent=1 // pred_region
      %20 = dma.done [#allocation3], 128
    $region9: #{tpu_custom_call.1} parent=1 // pred_fallthru
      _
    %v21 = vld [vmem:[#allocation2] sm:$0xff]
    %22 = vrot.lane.b32.xlu0 %v21, 1
    %v23 = vpop.permute.xlu0 %22
    %24 = vst [vmem:[#allocation5] sm:$0xff] %v23
    // Predicated region
    $region10: #{tpu_custom_call.1} parent=1 // pred_check
      _
    $region11: #{tpu_custom_call.1} parent=1 // pred_check_branch
      %26 = sbr.rel (0) target = $region13
    $region12: #{tpu_custom_call.1} parent=1 // pred_region
      %s28 = ssub.s32 128, 128
      %29 = vsyncadd [#allocation4], %s28
      %s31 = sshll.u32 [#allocation5], 4
      %s32 = int_to_ptr.vmem [resolvable:$true] %s31
      %34 = dma.vmem_to_hbm [thread:$0]  %s32, 128, %s1, [#allocation4]
    $region13: #{tpu_custom_call.1} parent=1 // pred_fallthru
      _
    // Predicated region
    $region14: #{tpu_custom_call.1} parent=1 // pred_check
      _
    $region15: #{tpu_custom_call.1} parent=1 // pred_check_branch
      %36 = sbr.rel (0) target = $region17
    $region16: #{tpu_custom_call.1} parent=1 // pred_region
      %37 = dma.done [#allocation4], 128
    $region17: #{tpu_custom_call.1} parent=1 // pred_fallthru
      _
    %38 = vsyncpa [#allocation3], 1
    %39 = vsyncpa [#allocation4], 1

</llo_original>
